<compile_context>
chip_gen: v6e
topology: v6e:2x2x1
jax: 0.10.0
libtpu: 0.0.40
codegen_flags: <defaults>
</compile_context>

<pallas_src>
import math
import functools

import jax
import jax.numpy as jnp
from jax.experimental import pallas as pl
from jax.experimental.pallas import tpu as pltpu  # noqa: F401  (TPU backend)


# ------------------------------ Pallas kernel ------------------------------

def _pma_kernel(x_ref, s_ref, wq_ref, bq_ref, wk_ref, bk_ref, wv_ref, bv_ref,
                wo_ref, bo_ref, hmask_ref, seg_ref, bsel_ref, o_ref,
                *, num_heads, dim_V, B):
    """Fused PMA forward, fully vectorized over batch and heads.

    x_ref   : (B*n, dK)            batch folded onto the sublane axis
    s_ref   : (n_seeds, dim)       seeds, shared across the batch
    hmask   : (H*B*n, dim_V)       row block h == head-h column mask
    seg     : (H*B*n, H*B*n)       block-diag ones, block size n (softmax seg)
    bsel    : (B*ns, H*B*n)        1 where output-row batch == column batch
    o_ref   : (B*ns, dim_V)
    """
    f32 = jnp.float32
    # Scale is 1/sqrt(dim_V), NOT 1/sqrt(head_dim): matches the PyTorch
    # reference (Lee et al. Set Transformer).  Do not "fix".
    scale = 1.0 / math.sqrt(dim_V)

    # --- projections: one matmul each, whole batch folded on sublanes -------
    q = jnp.dot(s_ref[...], wq_ref[...], preferred_element_type=f32) + bq_ref[...]
    x = x_ref[...]
    k = jnp.dot(x, wk_ref[...], preferred_element_type=f32) + bk_ref[...]   # (B*n, dV)
    v = jnp.dot(x, wv_ref[...], preferred_element_type=f32) + bv_ref[...]   # (B*n, dV)

    # Replicate the tiny projected seeds per batch row-block: (B*ns, dV).
    qb = jnp.concatenate([q] * B, axis=0)

    # Head-expand K / V once for the whole batch (row block h = head-h masked
    # copy; zeroed columns contribute exactly 0 to the contractions below).
    hmask = hmask_ref[...]
    kbig = jnp.concatenate([k] * num_heads, axis=0) * hmask                 # (H*B*n, dV)
    vbig = jnp.concatenate([v] * num_heads, axis=0) * hmask                 # (H*B*n, dV)

    # --- scores: ALL heads x ALL batches in ONE matmul ----------------------
    s_all = jax.lax.dot_general(qb * scale, kbig, (((1,), (1,)), ((), ())),
                                preferred_element_type=f32)                 # (B*ns, H*B*n)

    # Segmented softmax: every length-n lane segment is one (head, batch)
    # score row.  A single global row max is a valid stabilizer for every
    # segment; per-segment sums come from one block-diagonal matmul, and the
    # reciprocal runs on the EUP (approx) instead of VALU division.
    m = jnp.max(s_all, axis=-1, keepdims=True)
    p = jnp.exp(s_all - m)
    denom = jnp.dot(p, seg_ref[...], preferred_element_type=f32)            # seg sums
    a = p * pl.reciprocal(denom, approx=True) * bsel_ref[...]               # (B*ns, H*B*n)

    # --- AV + residual: heads AND batches reassembled by ONE matmul ---------
    o = qb + jnp.dot(a, vbig, preferred_element_type=f32)                   # (B*ns, dV)

    # O = O + relu(fc_o(O))
    o = o + jnp.maximum(
        jnp.dot(o, wo_ref[...], preferred_element_type=f32) + bo_ref[...], 0.0)

    # Single store of the whole result.
    o_ref[...] = o


# -------------------------------- wrapper ----------------------------------

def pma_forward(params, X, num_heads):
    """params: {'S': (1, num_seeds, dim), 'mab': {fc_q, fc_k, fc_v, fc_o}}."""
    B, n, dK = X.shape
    S = params['S']
    n_seeds, dV = S.shape[1], S.shape[2]
    assert dV % num_heads == 0, "dim_V must be divisible by num_heads"
    mab = params['mab']
    dh = dV // num_heads
    HBn = num_heads * B * n

    # Static selection/mask constants (batch- and data-invariant): built here
    # once so the kernel itself has no iota / integer-division work.
    head_of_row = jnp.arange(HBn) // (B * n)
    head_of_col = jnp.arange(dV) // dh
    hmask = (head_of_row[:, None] == head_of_col[None, :]).astype(jnp.float32)

    seg = jnp.arange(HBn) // n
    seg_ones = (seg[:, None] == seg[None, :]).astype(jnp.float32)

    row_b = jnp.arange(B * n_seeds) // n_seeds
    col_b = (jnp.arange(HBn) // n) % B
    bsel = (row_b[:, None] == col_b[None, :]).astype(jnp.float32)

    kern = functools.partial(_pma_kernel, num_heads=num_heads, dim_V=dV, B=B)

    # Single program, no grid: every operand is a whole-array VMEM ref and the
    # only HBM store is the final (B*ns, dV) result.  (See header NOTE for the
    # production-shape grid/pipelining path.)
    out = pl.pallas_call(
        kern,
        out_shape=jax.ShapeDtypeStruct((B * n_seeds, dV), jnp.float32),
    )(X.reshape(B * n, dK), S[0],
      mab['fc_q']['w'], mab['fc_q']['b'],
      mab['fc_k']['w'], mab['fc_k']['b'],
      mab['fc_v']['w'], mab['fc_v']['b'],
      mab['fc_o']['w'], mab['fc_o']['b'],
      hmask, seg_ones, bsel)
    return out.reshape(B, n_seeds, dV)


# --------------------------- parameter init --------------------------------

def _init_linear(key, d_in, d_out):
    kw, kb = jax.random.split(key)
    bound = 1.0 / math.sqrt(d_in)
    return {'w': jax.random.uniform(kw, (d_in, d_out), jnp.float32, -bound, bound),
            'b': jax.random.uniform(kb, (1, d_out), jnp.float32, -bound, bound)}


def _init_mab(key, dq, dk, dv):
    k0, k1, k2, k3 = jax.random.split(key, 4)
    return {'fc_q': _init_linear(k0, dq, dv),
            'fc_k': _init_linear(k1, dk, dv),
            'fc_v': _init_linear(k2, dk, dv),
            'fc_o': _init_linear(k3, dv, dv)}


def _xavier(key, shape):
    fan_in, fan_out = shape[-2], shape[-1]
    bound = math.sqrt(6.0 / (fan_in + fan_out))
    return jax.random.uniform(key, shape, jnp.float32, -bound, bound)


def init_pma(key, dim, num_seeds):
    ks, km = jax.random.split(key)
    return {'S': _xavier(ks, (1, num_seeds, dim)),
            'mab': _init_mab(km, dim, dim, dim)}


# ------------------------ pure-JAX reference (check) ------------------------

def _mab_reference(p, Q, K, num_heads):
    Qp = Q @ p['fc_q']['w'] + p['fc_q']['b']
    Kp = K @ p['fc_k']['w'] + p['fc_k']['b']
    Vp = K @ p['fc_v']['w'] + p['fc_v']['b']
    dV = Qp.shape[-1]

    def split_heads(T):                       # torch.cat(split(dh, 2), 0)
        return jnp.concatenate(jnp.split(T, num_heads, axis=2), axis=0)

    Q_, K_, V_ = split_heads(Qp), split_heads(Kp), split_heads(Vp)
    A = jax.nn.softmax(
        jnp.einsum('bqd,bkd->bqk', Q_, K_) / math.sqrt(dV), axis=2)
    O = Q_ + jnp.einsum('bqk,bkd->bqd', A, V_)
    O = jnp.concatenate(jnp.split(O, num_heads, axis=0), axis=2)
    return O + jax.nn.relu(O @ p['fc_o']['w'] + p['fc_o']['b'])


def pma_reference(params, X, num_heads):
    B = X.shape[0]
    S = jnp.broadcast_to(params['S'], (B,) + params['S'].shape[1:])
    return _mab_reference(params['mab'], S, X, num_heads)


# ----------------------------------- main -----------------------------------

if __name__ == "__main__":
    key = jax.random.PRNGKey(0)
    B, set_size, dim, num_heads, num_seeds = 2, 8, 8, 4, 3

    kparam, kx = jax.random.split(key)
    params = init_pma(kparam, dim, num_seeds)
    X = jax.random.normal(kx, (B, set_size, dim), jnp.float32)

    fwd = jax.jit(functools.partial(pma_forward, num_heads=num_heads))
    out = fwd(params, X)
    jax.block_until_ready(out)

    ref = pma_reference(params, X, num_heads)
    assert out.shape == (B, num_seeds, dim), out.shape
    # Slightly wider tolerance than exact f32: the softmax denominator uses
    # the EUP approximate reciprocal (per the performance review).
    max_err = float(jnp.max(jnp.abs(out - ref)))
    assert jnp.allclose(out, ref, rtol=5e-3, atol=5e-3), max_err
    print("KERNEL_OK")
</pallas_src>

<mosaic_0001>
module attributes {stable_mosaic.version = 11 : i64} {
  func.func @_pma_kernel(%arg0: memref<16x8xf32, #tpu.memory_space<vmem>>, %arg1: memref<3x8xf32, #tpu.memory_space<vmem>>, %arg2: memref<8x8xf32, #tpu.memory_space<vmem>>, %arg3: memref<1x8xf32, #tpu.memory_space<vmem>>, %arg4: memref<8x8xf32, #tpu.memory_space<vmem>>, %arg5: memref<1x8xf32, #tpu.memory_space<vmem>>, %arg6: memref<8x8xf32, #tpu.memory_space<vmem>>, %arg7: memref<1x8xf32, #tpu.memory_space<vmem>>, %arg8: memref<8x8xf32, #tpu.memory_space<vmem>>, %arg9: memref<1x8xf32, #tpu.memory_space<vmem>>, %arg10: memref<64x8xf32, #tpu.memory_space<vmem>>, %arg11: memref<64x64xf32, #tpu.memory_space<vmem>>, %arg12: memref<6x64xf32, #tpu.memory_space<vmem>>, %arg13: memref<6x8xf32, #tpu.memory_space<vmem>>) attributes {dimension_semantics = [], scalar_prefetch = 0 : i64, scratch_operands = 0 : i64, tpu.core_type = #tpu.core_type<tc>} {
    %c0 = arith.constant 0 : index
    %c0_0 = arith.constant 0 : index
    %0 = vector.load %arg1[%c0, %c0_0] : memref<3x8xf32, #tpu.memory_space<vmem>>, vector<3x8xf32>
    %c0_1 = arith.constant 0 : index
    %c0_2 = arith.constant 0 : index
    %1 = vector.load %arg2[%c0_1, %c0_2] : memref<8x8xf32, #tpu.memory_space<vmem>>, vector<8x8xf32>
    %cst = arith.constant dense<0.000000e+00> : vector<3x8xf32>
    %2 = tpu.matmul %0, %1, %cst {dimension_numbers = #tpu.dot_dimension_numbers<[1], [0], [0], [1], [0, 0, 1, 1], [], []>} : vector<3x8xf32>, vector<8x8xf32>, vector<3x8xf32> -> vector<3x8xf32>
    %c0_3 = arith.constant 0 : index
    %c0_4 = arith.constant 0 : index
    %3 = vector.load %arg3[%c0_3, %c0_4] : memref<1x8xf32, #tpu.memory_space<vmem>>, vector<1x8xf32>
    %4 = vector.broadcast %3 : vector<1x8xf32> to vector<3x8xf32>
    %5 = arith.addf %2, %4 : vector<3x8xf32>
    %c0_5 = arith.constant 0 : index
    %c0_6 = arith.constant 0 : index
    %6 = vector.load %arg0[%c0_5, %c0_6] : memref<16x8xf32, #tpu.memory_space<vmem>>, vector<16x8xf32>
    %c0_7 = arith.constant 0 : index
    %c0_8 = arith.constant 0 : index
    %7 = vector.load %arg4[%c0_7, %c0_8] : memref<8x8xf32, #tpu.memory_space<vmem>>, vector<8x8xf32>
    %cst_9 = arith.constant dense<0.000000e+00> : vector<16x8xf32>
    %8 = tpu.matmul %6, %7, %cst_9 {dimension_numbers = #tpu.dot_dimension_numbers<[1], [0], [0], [1], [0, 0, 1, 1], [], []>} : vector<16x8xf32>, vector<8x8xf32>, vector<16x8xf32> -> vector<16x8xf32>
    %c0_10 = arith.constant 0 : index
    %c0_11 = arith.constant 0 : index
    %9 = vector.load %arg5[%c0_10, %c0_11] : memref<1x8xf32, #tpu.memory_space<vmem>>, vector<1x8xf32>
    %10 = vector.broadcast %9 : vector<1x8xf32> to vector<16x8xf32>
    %11 = arith.addf %8, %10 : vector<16x8xf32>
    %c0_12 = arith.constant 0 : index
    %c0_13 = arith.constant 0 : index
    %12 = vector.load %arg6[%c0_12, %c0_13] : memref<8x8xf32, #tpu.memory_space<vmem>>, vector<8x8xf32>
    %cst_14 = arith.constant dense<0.000000e+00> : vector<16x8xf32>
    %13 = tpu.matmul %6, %12, %cst_14 {dimension_numbers = #tpu.dot_dimension_numbers<[1], [0], [0], [1], [0, 0, 1, 1], [], []>} : vector<16x8xf32>, vector<8x8xf32>, vector<16x8xf32> -> vector<16x8xf32>
    %c0_15 = arith.constant 0 : index
    %c0_16 = arith.constant 0 : index
    %14 = vector.load %arg7[%c0_15, %c0_16] : memref<1x8xf32, #tpu.memory_space<vmem>>, vector<1x8xf32>
    %15 = vector.broadcast %14 : vector<1x8xf32> to vector<16x8xf32>
    %16 = arith.addf %13, %15 : vector<16x8xf32>
    %17 = tpu.concatenate %5, %5 in 0 : vector<3x8xf32>, vector<3x8xf32> -> vector<6x8xf32>
    %c0_17 = arith.constant 0 : index
    %c0_18 = arith.constant 0 : index
    %18 = vector.load %arg10[%c0_17, %c0_18] : memref<64x8xf32, #tpu.memory_space<vmem>>, vector<64x8xf32>
    %19 = tpu.concatenate %11, %11, %11, %11 in 0 : vector<16x8xf32>, vector<16x8xf32>, vector<16x8xf32>, vector<16x8xf32> -> vector<64x8xf32>
    %20 = arith.mulf %19, %18 : vector<64x8xf32>
    %21 = tpu.concatenate %16, %16, %16, %16 in 0 : vector<16x8xf32>, vector<16x8xf32>, vector<16x8xf32>, vector<16x8xf32> -> vector<64x8xf32>
    %22 = arith.mulf %21, %18 : vector<64x8xf32>
    %cst_19 = arith.constant 0.353553385 : f32
    %23 = vector.broadcast %cst_19 : f32 to vector<6x8xf32>
    %24 = arith.mulf %17, %23 : vector<6x8xf32>
    %cst_20 = arith.constant dense<0.000000e+00> : vector<6x64xf32>
    %25 = tpu.matmul %24, %20, %cst_20 {dimension_numbers = #tpu.dot_dimension_numbers<[1], [1], [0], [0], [0, 0, 1, 0], [], []>} : vector<6x8xf32>, vector<64x8xf32>, vector<6x64xf32> -> vector<6x64xf32>
    %cst_21 = arith.constant dense<0xFF800000> : vector<6xf32>
    %26 = vector.multi_reduction <maximumf>, %25, %cst_21 [1] : vector<6x64xf32> to vector<6xf32>
    %27 = vector.shape_cast %26 : vector<6xf32> to vector<6x1xf32>
    %28 = vector.broadcast %27 : vector<6x1xf32> to vector<6x64xf32>
    %29 = arith.subf %25, %28 : vector<6x64xf32>
    %30 = math.exp %29 : vector<6x64xf32>
    %c0_22 = arith.constant 0 : index
    %c0_23 = arith.constant 0 : index
    %31 = vector.load %arg11[%c0_22, %c0_23] : memref<64x64xf32, #tpu.memory_space<vmem>>, vector<64x64xf32>
    %cst_24 = arith.constant dense<0.000000e+00> : vector<6x64xf32>
    %32 = tpu.matmul %30, %31, %cst_24 {dimension_numbers = #tpu.dot_dimension_numbers<[1], [0], [0], [1], [0, 0, 1, 1], [], []>} : vector<6x64xf32>, vector<64x64xf32>, vector<6x64xf32> -> vector<6x64xf32>
    %33 = tpu.reciprocal %32 {approx = true} : vector<6x64xf32> -> vector<6x64xf32>
    %34 = arith.mulf %30, %33 : vector<6x64xf32>
    %c0_25 = arith.constant 0 : index
    %c0_26 = arith.constant 0 : index
    %35 = vector.load %arg12[%c0_25, %c0_26] : memref<6x64xf32, #tpu.memory_space<vmem>>, vector<6x64xf32>
    %36 = arith.mulf %34, %35 : vector<6x64xf32>
    %cst_27 = arith.constant dense<0.000000e+00> : vector<6x8xf32>
    %37 = tpu.matmul %36, %22, %cst_27 {dimension_numbers = #tpu.dot_dimension_numbers<[1], [0], [0], [1], [0, 0, 1, 1], [], []>} : vector<6x64xf32>, vector<64x8xf32>, vector<6x8xf32> -> vector<6x8xf32>
    %38 = arith.addf %17, %37 : vector<6x8xf32>
    %c0_28 = arith.constant 0 : index
    %c0_29 = arith.constant 0 : index
    %39 = vector.load %arg8[%c0_28, %c0_29] : memref<8x8xf32, #tpu.memory_space<vmem>>, vector<8x8xf32>
    %cst_30 = arith.constant dense<0.000000e+00> : vector<6x8xf32>
    %40 = tpu.matmul %38, %39, %cst_30 {dimension_numbers = #tpu.dot_dimension_numbers<[1], [0], [0], [1], [0, 0, 1, 1], [], []>} : vector<6x8xf32>, vector<8x8xf32>, vector<6x8xf32> -> vector<6x8xf32>
    %c0_31 = arith.constant 0 : index
    %c0_32 = arith.constant 0 : index
    %41 = vector.load %arg9[%c0_31, %c0_32] : memref<1x8xf32, #tpu.memory_space<vmem>>, vector<1x8xf32>
    %42 = vector.broadcast %41 : vector<1x8xf32> to vector<6x8xf32>
    %43 = arith.addf %40, %42 : vector<6x8xf32>
    %cst_33 = arith.constant 0.000000e+00 : f32
    %44 = vector.broadcast %cst_33 : f32 to vector<6x8xf32>
    %45 = arith.maximumf %43, %44 : vector<6x8xf32>
    %46 = arith.addf %38, %45 : vector<6x8xf32>
    %c0_34 = arith.constant 0 : index
    %c0_35 = arith.constant 0 : index
    %47 = vector.load %arg13[%c0_34, %c0_35] : memref<6x8xf32, #tpu.memory_space<vmem>>, vector<6x8xf32>
    tpu.vector_store %arg13[%c0_34, %c0_35], %46 {strides = array<i32>} : memref<6x8xf32, #tpu.memory_space<vmem>>, vector<6x8xf32>,
    return
  }
}

</mosaic_0001>

<llo_original>
// kernel: pma_forward.1
$region0: #{pma_forward.1}
  #allocation0 [shape = 'u32[]', space=smem, size = 0x4, offset = 0x4, fixed_abs, tag = 'smem constant byte address 0x4 - core index']
  #allocation1 [shape = 'u32[144,128]{1,0:T(1,128)}', space=vmem, size = 0x12000, scoped, tag = 'internal scratch']
  %s0 = inlined_call_operand.vmem [shape: f32[16,8], index: 0, kind: input, shape index: {}]
  %s1 = inlined_call_operand.vmem [shape: f32[3,8], index: 1, kind: input, shape index: {}]
  %s2 = inlined_call_operand.vmem [shape: f32[8,8], index: 2, kind: input, shape index: {}]
  %s3 = inlined_call_operand.vmem [shape: f32[1,8], index: 3, kind: input, shape index: {}]
  %s4 = inlined_call_operand.vmem [shape: f32[8,8], index: 4, kind: input, shape index: {}]
  %s5 = inlined_call_operand.vmem [shape: f32[1,8], index: 5, kind: input, shape index: {}]
  %s6 = inlined_call_operand.vmem [shape: f32[8,8], index: 6, kind: input, shape index: {}]
  %s7 = inlined_call_operand.vmem [shape: f32[1,8], index: 7, kind: input, shape index: {}]
  %s8 = inlined_call_operand.vmem [shape: f32[8,8], index: 8, kind: input, shape index: {}]
  %s9 = inlined_call_operand.vmem [shape: f32[1,8], index: 9, kind: input, shape index: {}]
  %s10 = inlined_call_operand.vmem [shape: f32[64,8], index: 10, kind: input, shape index: {}]
  %s11 = inlined_call_operand.vmem [shape: f32[64,64], index: 11, kind: input, shape index: {}]
  %s12 = inlined_call_operand.vmem [shape: f32[6,64], index: 12, kind: input, shape index: {}]
  %s13 = inlined_call_operand.vmem [shape: f32[6,8], index: 13, kind: output, shape index: {}]
  %s14 = sld [smem:[#allocation0]]
  $region62: #{pma_forward.1} parent=0
    _
  %s16 = ssub.s32 1, %s14
  %s17 = scalar_select 0, %s16, %s14
  // Predicated region
  $region2: #{pma_forward.1} parent=0 // pred_check
    _
  $region3: #{pma_forward.1} parent=0 // pred_check_branch
    %19 = sbr.rel (0) target = $region5
  $region4: #{pma_forward.1} parent=0 // pred_region
    _
  $region5: #{pma_forward.1} parent=0 // pred_fallthru
    _
  // Predicated region
  $region6: #{pma_forward.1} parent=0 // pred_check
    _
  $region7: #{pma_forward.1} parent=0 // pred_check_branch
    %21 = sbr.rel (0) target = $region9
  $region8: #{pma_forward.1} parent=0 // pred_region
    _
  $region9: #{pma_forward.1} parent=0 // pred_fallthru
    _
  // Predicated region
  $region10: #{pma_forward.1} parent=0 // pred_check
    _
  $region11: #{pma_forward.1} parent=0 // pred_check_branch
    %23 = sbr.rel (0) target = $region13
  $region12: #{pma_forward.1} parent=0 // pred_region
    _
  $region13: #{pma_forward.1} parent=0 // pred_fallthru
    _
  // Predicated region
  $region14: #{pma_forward.1} parent=0 // pred_check
    _
  $region15: #{pma_forward.1} parent=0 // pred_check_branch
    %25 = sbr.rel (0) target = $region17
  $region16: #{pma_forward.1} parent=0 // pred_region
    _
  $region17: #{pma_forward.1} parent=0 // pred_fallthru
    _
  // Predicated region
  $region18: #{pma_forward.1} parent=0 // pred_check
    _
  $region19: #{pma_forward.1} parent=0 // pred_check_branch
    %27 = sbr.rel (0) target = $region21
  $region20: #{pma_forward.1} parent=0 // pred_region
    _
  $region21: #{pma_forward.1} parent=0 // pred_fallthru
    _
  // Predicated region
  $region22: #{pma_forward.1} parent=0 // pred_check
    _
  $region23: #{pma_forward.1} parent=0 // pred_check_branch
    %29 = sbr.rel (0) target = $region25
  $region24: #{pma_forward.1} parent=0 // pred_region
    _
  $region25: #{pma_forward.1} parent=0 // pred_fallthru
    _
  // Predicated region
  $region26: #{pma_forward.1} parent=0 // pred_check
    _
  $region27: #{pma_forward.1} parent=0 // pred_check_branch
    %31 = sbr.rel (0) target = $region29
  $region28: #{pma_forward.1} parent=0 // pred_region
    _
  $region29: #{pma_forward.1} parent=0 // pred_fallthru
    _
  // Predicated region
  $region30: #{pma_forward.1} parent=0 // pred_check
    _
  $region31: #{pma_forward.1} parent=0 // pred_check_branch
    %33 = sbr.rel (0) target = $region33
  $region32: #{pma_forward.1} parent=0 // pred_region
    _
  $region33: #{pma_forward.1} parent=0 // pred_fallthru
    _
  // Predicated region
  $region34: #{pma_forward.1} parent=0 // pred_check
    _
  $region35: #{pma_forward.1} parent=0 // pred_check_branch
    %35 = sbr.rel (0) target = $region37
  $region36: #{pma_forward.1} parent=0 // pred_region
    _
  $region37: #{pma_forward.1} parent=0 // pred_fallthru
    _
  // Predicated region
  $region38: #{pma_forward.1} parent=0 // pred_check
    _
  $region39: #{pma_forward.1} parent=0 // pred_check_branch
    %37 = sbr.rel (0) target = $region41
  $region40: #{pma_forward.1} parent=0 // pred_region
    _
  $region41: #{pma_forward.1} parent=0 // pred_fallthru
    _
  // Predicated region
  $region42: #{pma_forward.1} parent=0 // pred_check
    _
  $region43: #{pma_forward.1} parent=0 // pred_check_branch
    %39 = sbr.rel (0) target = $region45
  $region44: #{pma_forward.1} parent=0 // pred_region
    _
  $region45: #{pma_forward.1} parent=0 // pred_fallthru
    _
  // Predicated region
  $region46: #{pma_forward.1} parent=0 // pred_check
    _
  $region47: #{pma_forward.1} parent=0 // pred_check_branch
    %41 = sbr.rel (0) target = $region49
  $region48: #{pma_forward.1} parent=0 // pred_region
    _
  $region49: #{pma_forward.1} parent=0 // pred_fallthru
    _
  // Predicated region
  $region50: #{pma_forward.1} parent=0 // pred_check
    _
  $region51: #{pma_forward.1} parent=0 // pred_check_branch
    %43 = sbr.rel (0) target = $region53
  $region52: #{pma_forward.1} parent=0 // pred_region
    _
  $region53: #{pma_forward.1} parent=0 // pred_fallthru
    _
  %v44 = vld [vmem:[%s1] sm:$0x7]
  %v45 = vld [vmem:[%s2] sm:$0xff]
  %v46 = vld [vmem:[%s3] sm:$0x1]
  %v48 = vlaneseq
  %v49 = vshrl.u32 %v48, 7
  %v50 = vsub.s32 0, %v49
  %v51 = vrot.slane %v46, %v50
  %vm53 = vcmask 64512
  %v55 = vsel %vm53, %v44, 0
  %57 = vmatprep.subr.mxu0 0.0
  %58 = vmatpush1.msra.mxu0 0.0
  %59 = vmatprep.subr.mxu0 0.0
  %60 = vmatpush1.msra.mxu0 0.0
  %61 = vmatprep.subr.mxu0 0.0
  %62 = vmatpush1.msra.mxu0 0.0
  %63 = vmatprep.subr.mxu0 0.0
  %64 = vmatpush1.msra.mxu0 0.0
  %65 = vmatprep.subr.mxu0 0.0
  %66 = vmatpush1.msra.mxu0 0.0
  %67 = vmatprep.subr.mxu0 0.0
  %68 = vmatpush1.msra.mxu0 0.0
  %69 = vmatprep.subr.mxu0 0.0
  %70 = vmatpush1.msra.mxu0 0.0
  %71 = vmatprep.subr.mxu0 0.0
  %72 = vmatpush1.msra.mxu0 0.0
  %73 = vmatprep.subr.mxu0 0.0
  %74 = vmatpush1.msra.mxu0 0.0
  %75 = vmatprep.subr.mxu0 0.0
  %76 = vmatpush1.msra.mxu0 0.0
  %77 = vmatprep.subr.mxu0 0.0
  %78 = vmatpush1.msra.mxu0 0.0
  %79 = vmatprep.subr.mxu0 0.0
  %80 = vmatpush1.msra.mxu0 0.0
  %81 = vmatprep.subr.mxu0 0.0
  %82 = vmatpush1.msra.mxu0 0.0
  %83 = vmatprep.subr.mxu0 0.0
  %84 = vmatpush1.msra.mxu0 0.0
  %85 = vmatprep.subr.mxu0 0.0
  %86 = vmatpush1.msra.mxu0 0.0
  %87 = vmatprep.subr.mxu0 0.0
  %88 = vmatpush1.msra.mxu0 %v45
  %89 = vmatprep.subr.mxu0 0.0
  %90 = vmatpush2.msra.mxu0 0.0
  %91 = vmatprep.subr.mxu0 0.0
  %92 = vmatpush2.msra.mxu0 0.0
  %93 = vmatprep.subr.mxu0 0.0
  %94 = vmatpush2.msra.mxu0 0.0
  %95 = vmatprep.subr.mxu0 0.0
  %96 = vmatpush2.msra.mxu0 0.0
  %97 = vmatprep.subr.mxu0 0.0
  %98 = vmatpush2.msra.mxu0 0.0
  %99 = vmatprep.subr.mxu0 0.0
  %100 = vmatpush2.msra.mxu0 0.0
  %101 = vmatprep.subr.mxu0 0.0
  %102 = vmatpush2.msra.mxu0 0.0
  %103 = vmatprep.subr.mxu0 0.0
  %104 = vmatpush2.msra.mxu0 0.0
  %105 = vmatprep.subr.mxu0 0.0
  %106 = vmatpush2.msra.mxu0 0.0
  %107 = vmatprep.subr.mxu0 0.0
  %108 = vmatpush2.msra.mxu0 0.0
  %109 = vmatprep.subr.mxu0 0.0
  %110 = vmatpush2.msra.mxu0 0.0
  %111 = vmatprep.subr.mxu0 0.0
  %112 = vmatpush2.msra.mxu0 0.0
  %113 = vmatprep.subr.mxu0 0.0
  %114 = vmatpush2.msra.mxu0 0.0
  %115 = vmatprep.subr.mxu0 0.0
  %116 = vmatpush2.msra.mxu0 0.0
  %117 = vmatprep.subr.mxu0 0.0
  %118 = vmatpush2.msra.mxu0 0.0
  %119 = vmatprep.subr.mxu0 0.0
  %120 = vmatpush2.msra.mxu0 0.0
  %121 = vmatprep.mubr.f32.mxu0 0.0
  %122 = vmatmul.mubr.f32.gmra.mxu0 %v55
  %v123 = vpop.f32.mrf.mxu0
  %v124 = vadd.f32 %v51, %v123
  %v125 = vpop.f32.mrf.mxu0
  %126 = vdwg.mxu0
  %v127 = vld [vmem:[%s0] sm:$0xff]
  %v128 = vld [vmem:[%s0 + $0x8] sm:$0xff]
  %v129 = vld [vmem:[%s4] sm:$0xff]
  %v130 = vld [vmem:[%s5] sm:$0x1]
  %v132 = vlaneseq
  %v133 = vshrl.u32 %v132, 7
  %v134 = vsub.s32 0, %v133
  %v135 = vrot.slane %v130, %v134
  %v138 = vsel %vm53, %v127, 0
  %v141 = vsel %vm53, %v128, 0
  %143 = vmatprep.subr.mxu0 0.0
  %144 = vmatpush1.msra.mxu0 0.0
  %145 = vmatprep.subr.mxu0 0.0
  %146 = vmatpush1.msra.mxu0 0.0
  %147 = vmatprep.subr.mxu0 0.0
  %148 = vmatpush1.msra.mxu0 0.0
  %149 = vmatprep.subr.mxu0 0.0
  %150 = vmatpush1.msra.mxu0 0.0
  %151 = vmatprep.subr.mxu0 0.0
  %152 = vmatpush1.msra.mxu0 0.0
  %153 = vmatprep.subr.mxu0 0.0
  %154 = vmatpush1.msra.mxu0 0.0
  %155 = vmatprep.subr.mxu0 0.0
  %156 = vmatpush1.msra.mxu0 0.0
  %157 = vmatprep.subr.mxu0 0.0
  %158 = vmatpush1.msra.mxu0 0.0
  %159 = vmatprep.subr.mxu0 0.0
  %160 = vmatpush1.msra.mxu0 0.0
  %161 = vmatprep.subr.mxu0 0.0
  %162 = vmatpush1.msra.mxu0 0.0
  %163 = vmatprep.subr.mxu0 0.0
  %164 = vmatpush1.msra.mxu0 0.0
  %165 = vmatprep.subr.mxu0 0.0
  %166 = vmatpush1.msra.mxu0 0.0
  %167 = vmatprep.subr.mxu0 0.0
  %168 = vmatpush1.msra.mxu0 0.0
  %169 = vmatprep.subr.mxu0 0.0
  %170 = vmatpush1.msra.mxu0 0.0
  %171 = vmatprep.subr.mxu0 0.0
  %172 = vmatpush1.msra.mxu0 0.0
  %173 = vmatprep.subr.mxu0 0.0
  %174 = vmatpush1.msra.mxu0 %v129
  %175 = vmatprep.subr.mxu0 0.0
  %176 = vmatpush2.msra.mxu0 0.0
  %177 = vmatprep.subr.mxu0 0.0
  %178 = vmatpush2.msra.mxu0 0.0
  %179 = vmatprep.subr.mxu0 0.0
  %180 = vmatpush2.msra.mxu0 0.0
  %181 = vmatprep.subr.mxu0 0.0
  %182 = vmatpush2.msra.mxu0 0.0
  %183 = vmatprep.subr.mxu0 0.0
  %184 = vmatpush2.msra.mxu0 0.0
  %185 = vmatprep.subr.mxu0 0.0
  %186 = vmatpush2.msra.mxu0 0.0
  %187 = vmatprep.subr.mxu0 0.0
  %188 = vmatpush2.msra.mxu0 0.0
  %189 = vmatprep.subr.mxu0 0.0
  %190 = vmatpush2.msra.mxu0 0.0
  %191 = vmatprep.subr.mxu0 0.0
  %192 = vmatpush2.msra.mxu0 0.0
  %193 = vmatprep.subr.mxu0 0.0
  %194 = vmatpush2.msra.mxu0 0.0
  %195 = vmatprep.subr.mxu0 0.0
  %196 = vmatpush2.msra.mxu0 0.0
  %197 = vmatprep.subr.mxu0 0.0
  %198 = vmatpush2.msra.mxu0 0.0
  %199 = vmatprep.subr.mxu0 0.0
  %200 = vmatpush2.msra.mxu0 0.0
  %201 = vmatprep.subr.mxu0 0.0
  %202 = vmatpush2.msra.mxu0 0.0
  %203 = vmatprep.subr.mxu0 0.0
  %204 = vmatpush2.msra.mxu0 0.0
  %205 = vmatprep.subr.mxu0 0.0
  %206 = vmatpush2.msra.mxu0 0.0
  %207 = vmatprep.mubr.f32.mxu0 0.0
  %208 = vmatmul.mubr.f32.gmra.mxu0 %v138
  %v209 = vpop.f32.mrf.mxu0
  %v210 = vadd.f32 %v135, %v209
  %v211 = vpop.f32.mrf.mxu0
  %212 = vmatprep.mubr.f32.mxu0 0.0
  %213 = vmatmul.mubr.f32.gmra.mxu0 %v141
  %v214 = vpop.f32.mrf.mxu0
  %v215 = vadd.f32 %v135, %v214
  %v216 = vpop.f32.mrf.mxu0
  %217 = vdwg.mxu0
  %v218 = vld [vmem:[%s6] sm:$0xff]
  %v219 = vld [vmem:[%s7] sm:$0x1]
  %v221 = vlaneseq
  %v222 = vshrl.u32 %v221, 7
  %v223 = vsub.s32 0, %v222
  %v224 = vrot.slane %v219, %v223
  %226 = vmatprep.subr.mxu0 0.0
  %227 = vmatpush1.msra.mxu0 0.0
  %228 = vmatprep.subr.mxu0 0.0
  %229 = vmatpush1.msra.mxu0 0.0
  %230 = vmatprep.subr.mxu0 0.0
  %231 = vmatpush1.msra.mxu0 0.0
  %232 = vmatprep.subr.mxu0 0.0
  %233 = vmatpush1.msra.mxu0 0.0
  %234 = vmatprep.subr.mxu0 0.0
  %235 = vmatpush1.msra.mxu0 0.0
  %236 = vmatprep.subr.mxu0 0.0
  %237 = vmatpush1.msra.mxu0 0.0
  %238 = vmatprep.subr.mxu0 0.0
  %239 = vmatpush1.msra.mxu0 0.0
  %240 = vmatprep.subr.mxu0 0.0
  %241 = vmatpush1.msra.mxu0 0.0
  %242 = vmatprep.subr.mxu0 0.0
  %243 = vmatpush1.msra.mxu0 0.0
  %244 = vmatprep.subr.mxu0 0.0
  %245 = vmatpush1.msra.mxu0 0.0
  %246 = vmatprep.subr.mxu0 0.0
  %247 = vmatpush1.msra.mxu0 0.0
  %248 = vmatprep.subr.mxu0 0.0
  %249 = vmatpush1.msra.mxu0 0.0
  %250 = vmatprep.subr.mxu0 0.0
  %251 = vmatpush1.msra.mxu0 0.0
  %252 = vmatprep.subr.mxu0 0.0
  %253 = vmatpush1.msra.mxu0 0.0
  %254 = vmatprep.subr.mxu0 0.0
  %255 = vmatpush1.msra.mxu0 0.0
  %256 = vmatprep.subr.mxu0 0.0
  %257 = vmatpush1.msra.mxu0 %v218
  %258 = vmatprep.subr.mxu0 0.0
  %259 = vmatpush2.msra.mxu0 0.0
  %260 = vmatprep.subr.mxu0 0.0
  %261 = vmatpush2.msra.mxu0 0.0
  %262 = vmatprep.subr.mxu0 0.0
  %263 = vmatpush2.msra.mxu0 0.0
  %264 = vmatprep.subr.mxu0 0.0
  %265 = vmatpush2.msra.mxu0 0.0
  %266 = vmatprep.subr.mxu0 0.0
  %267 = vmatpush2.msra.mxu0 0.0
  %268 = vmatprep.subr.mxu0 0.0
  %269 = vmatpush2.msra.mxu0 0.0
  %270 = vmatprep.subr.mxu0 0.0
  %271 = vmatpush2.msra.mxu0 0.0
  %272 = vmatprep.subr.mxu0 0.0
  %273 = vmatpush2.msra.mxu0 0.0
  %274 = vmatprep.subr.mxu0 0.0
  %275 = vmatpush2.msra.mxu0 0.0
  %276 = vmatprep.subr.mxu0 0.0
  %277 = vmatpush2.msra.mxu0 0.0
  %278 = vmatprep.subr.mxu0 0.0
  %279 = vmatpush2.msra.mxu0 0.0
  %280 = vmatprep.subr.mxu0 0.0
  %281 = vmatpush2.msra.mxu0 0.0
  %282 = vmatprep.subr.mxu0 0.0
  %283 = vmatpush2.msra.mxu0 0.0
  %284 = vmatprep.subr.mxu0 0.0
  %285 = vmatpush2.msra.mxu0 0.0
  %286 = vmatprep.subr.mxu0 0.0
  %287 = vmatpush2.msra.mxu0 0.0
  %288 = vmatprep.subr.mxu0 0.0
  %289 = vmatpush2.msra.mxu0 0.0
  %290 = vmatprep.mubr.f32.mxu0 0.0
  %291 = vmatmul.mubr.f32.gmra.mxu0 %v138
  %v292 = vpop.f32.mrf.mxu0
  %v293 = vadd.f32 %v224, %v292
  %v294 = vpop.f32.mrf.mxu0
  %295 = vmatprep.mubr.f32.mxu0 0.0
  %296 = vmatmul.mubr.f32.gmra.mxu0 %v141
  %v297 = vpop.f32.mrf.mxu0
  %v298 = vadd.f32 %v224, %v297
  %v299 = vpop.f32.mrf.mxu0
  %300 = vdwg.mxu0
  %v302 = vrot.slane %v124, 5
  %vm304 = vcmask 1042432
  %v305 = vsel %vm304, %v124, %v302
  %v306 = vld [vmem:[%s10] sm:$0xff]
  %v307 = vld [vmem:[%s10 + $0x8] sm:$0xff]
  %v308 = vld [vmem:[%s10 + $0x10] sm:$0xff]
  %v309 = vld [vmem:[%s10 + $0x18] sm:$0xff]
  %v310 = vld [vmem:[%s10 + $0x20] sm:$0xff]
  %v311 = vld [vmem:[%s10 + $0x28] sm:$0xff]
  %v312 = vld [vmem:[%s10 + $0x30] sm:$0xff]
  %v313 = vld [vmem:[%s10 + $0x38] sm:$0xff]
  %v314 = vmul.f32 %v210, %v306
  %v315 = vmul.f32 %v215, %v307
  %v316 = vmul.f32 %v210, %v308
  %v317 = vmul.f32 %v215, %v309
  %v318 = vmul.f32 %v210, %v310
  %v319 = vmul.f32 %v215, %v311
  %v320 = vmul.f32 %v210, %v312
  %v321 = vmul.f32 %v215, %v313
  %v322 = vmul.f32 %v293, %v306
  %v323 = vmul.f32 %v298, %v307
  %v324 = vmul.f32 %v293, %v308
  %v325 = vmul.f32 %v298, %v309
  %v326 = vmul.f32 %v293, %v310
  %v327 = vmul.f32 %v298, %v311
  %v328 = vmul.f32 %v293, %v312
  %v329 = vmul.f32 %v298, %v313
  %v330 = vmul.f32 %v305, 0.35355338
  %v332 = vsel %vm53, %v330, 0
  %v335 = vsel %vm53, %v314, 0
  %v338 = vsel %vm53, %v315, 0
  %v341 = vsel %vm53, %v316, 0
  %v344 = vsel %vm53, %v317, 0
  %v347 = vsel %vm53, %v318, 0
  %v350 = vsel %vm53, %v319, 0
  %v353 = vsel %vm53, %v320, 0
  %v356 = vsel %vm53, %v321, 0
  %358 = vmatprep.subr.mxu0 0.0
  %359 = vmatpush1.xpose.msra.mxu0 0.0
  %360 = vmatprep.subr.mxu0 0.0
  %361 = vmatpush1.xpose.msra.mxu0 0.0
  %362 = vmatprep.subr.mxu0 0.0
  %363 = vmatpush1.xpose.msra.mxu0 0.0
  %364 = vmatprep.subr.mxu0 0.0
  %365 = vmatpush1.xpose.msra.mxu0 0.0
  %366 = vmatprep.subr.mxu0 0.0
  %367 = vmatpush1.xpose.msra.mxu0 0.0
  %368 = vmatprep.subr.mxu0 0.0
  %369 = vmatpush1.xpose.msra.mxu0 0.0
  %370 = vmatprep.subr.mxu0 0.0
  %371 = vmatpush1.xpose.msra.mxu0 0.0
  %372 = vmatprep.subr.mxu0 0.0
  %373 = vmatpush1.xpose.msra.mxu0 0.0
  %374 = vmatprep.subr.mxu0 0.0
  %375 = vmatpush1.xpose.msra.mxu0 %v356
  %376 = vmatprep.subr.mxu0 0.0
  %377 = vmatpush1.xpose.msra.mxu0 %v353
  %378 = vmatprep.subr.mxu0 0.0
  %379 = vmatpush1.xpose.msra.mxu0 %v350
  %380 = vmatprep.subr.mxu0 0.0
  %381 = vmatpush1.xpose.msra.mxu0 %v347
  %382 = vmatprep.subr.mxu0 0.0
  %383 = vmatpush1.xpose.msra.mxu0 %v344
  %384 = vmatprep.subr.mxu0 0.0
  %385 = vmatpush1.xpose.msra.mxu0 %v341
  %386 = vmatprep.subr.mxu0 0.0
  %387 = vmatpush1.xpose.msra.mxu0 %v338
  %388 = vmatprep.subr.mxu0 0.0
  %389 = vmatpush1.xpose.msra.mxu0 %v335
  %390 = vmatprep.subr.mxu0 0.0
  %391 = vmatpush2.xpose.msra.mxu0 0.0
  %392 = vmatprep.subr.mxu0 0.0
  %393 = vmatpush2.xpose.msra.mxu0 0.0
  %394 = vmatprep.subr.mxu0 0.0
  %395 = vmatpush2.xpose.msra.mxu0 0.0
  %396 = vmatprep.subr.mxu0 0.0
  %397 = vmatpush2.xpose.msra.mxu0 0.0
  %398 = vmatprep.subr.mxu0 0.0
  %399 = vmatpush2.xpose.msra.mxu0 0.0
  %400 = vmatprep.subr.mxu0 0.0
  %401 = vmatpush2.xpose.msra.mxu0 0.0
  %402 = vmatprep.subr.mxu0 0.0
  %403 = vmatpush2.xpose.msra.mxu0 0.0
  %404 = vmatprep.subr.mxu0 0.0
  %405 = vmatpush2.xpose.msra.mxu0 0.0
  %406 = vmatprep.subr.mxu0 0.0
  %407 = vmatpush2.xpose.msra.mxu0 0.0
  %408 = vmatprep.subr.mxu0 0.0
  %409 = vmatpush2.xpose.msra.mxu0 0.0
  %410 = vmatprep.subr.mxu0 0.0
  %411 = vmatpush2.xpose.msra.mxu0 0.0
  %412 = vmatprep.subr.mxu0 0.0
  %413 = vmatpush2.xpose.msra.mxu0 0.0
  %414 = vmatprep.subr.mxu0 0.0
  %415 = vmatpush2.xpose.msra.mxu0 0.0
  %416 = vmatprep.subr.mxu0 0.0
  %417 = vmatpush2.xpose.msra.mxu0 0.0
  %418 = vmatprep.subr.mxu0 0.0
  %419 = vmatpush2.xpose.msra.mxu0 0.0
  %420 = vmatprep.subr.mxu0 0.0
  %421 = vmatpush2.xpose.msra.mxu0 0.0
  %422 = vmatprep.mubr.f32.mxu0 0.0
  %423 = vmatmul.mubr.f32.gmra.mxu0 %v332
  %v424 = vpop.f32.mrf.mxu0
  %v425 = vadd.f32 0.0, %v424
  %v426 = vpop.f32.mrf.mxu0
  %427 = vdwg.mxu0
  %vm428 = vcmask 521216
  %v429 = vsel %vm428, %v425, -inf
  %430 = vmax.xlane.f32.xlu0 %v429
  %v431 = vpop.xlane.xlu0 %430
  %v432 = vsub.f32 %v425, %v431
  %v433 = vmul.f32 %v432, 1.442695
  %v434 = vpow.pop %v433
  %v435 = vld [vmem:[%s11] sm:$0xff]
  %v436 = vld [vmem:[%s11 + $0x8] sm:$0xff]
  %v437 = vld [vmem:[%s11 + $0x10] sm:$0xff]
  %v438 = vld [vmem:[%s11 + $0x18] sm:$0xff]
  %v439 = vld [vmem:[%s11 + $0x20] sm:$0xff]
  %v440 = vld [vmem:[%s11 + $0x28] sm:$0xff]
  %v441 = vld [vmem:[%s11 + $0x30] sm:$0xff]
  %v442 = vld [vmem:[%s11 + $0x38] sm:$0xff]
  %vm443 = vcmask 523264
  %v445 = vsel %vm443, %v434, 0
  %447 = vmatprep.subr.mxu0 0.0
  %448 = vmatpush1.msra.mxu0 0.0
  %449 = vmatprep.subr.mxu0 0.0
  %450 = vmatpush1.msra.mxu0 0.0
  %451 = vmatprep.subr.mxu0 0.0
  %452 = vmatpush1.msra.mxu0 0.0
  %453 = vmatprep.subr.mxu0 0.0
  %454 = vmatpush1.msra.mxu0 0.0
  %455 = vmatprep.subr.mxu0 0.0
  %456 = vmatpush1.msra.mxu0 0.0
  %457 = vmatprep.subr.mxu0 0.0
  %458 = vmatpush1.msra.mxu0 0.0
  %459 = vmatprep.subr.mxu0 0.0
  %460 = vmatpush1.msra.mxu0 0.0
  %461 = vmatprep.subr.mxu0 0.0
  %462 = vmatpush1.msra.mxu0 0.0
  %463 = vmatprep.subr.mxu0 0.0
  %464 = vmatpush1.msra.mxu0 %v442
  %465 = vmatprep.subr.mxu0 0.0
  %466 = vmatpush1.msra.mxu0 %v441
  %467 = vmatprep.subr.mxu0 0.0
  %468 = vmatpush1.msra.mxu0 %v440
  %469 = vmatprep.subr.mxu0 0.0
  %470 = vmatpush1.msra.mxu0 %v439
  %471 = vmatprep.subr.mxu0 0.0
  %472 = vmatpush1.msra.mxu0 %v438
  %473 = vmatprep.subr.mxu0 0.0
  %474 = vmatpush1.msra.mxu0 %v437
  %475 = vmatprep.subr.mxu0 0.0
  %476 = vmatpush1.msra.mxu0 %v436
  %477 = vmatprep.subr.mxu0 0.0
  %478 = vmatpush1.msra.mxu0 %v435
  %479 = vmatprep.subr.mxu0 0.0
  %480 = vmatpush2.msra.mxu0 0.0
  %481 = vmatprep.subr.mxu0 0.0
  %482 = vmatpush2.msra.mxu0 0.0
  %483 = vmatprep.subr.mxu0 0.0
  %484 = vmatpush2.msra.mxu0 0.0
  %485 = vmatprep.subr.mxu0 0.0
  %486 = vmatpush2.msra.mxu0 0.0
  %487 = vmatprep.subr.mxu0 0.0
  %488 = vmatpush2.msra.mxu0 0.0
  %489 = vmatprep.subr.mxu0 0.0
  %490 = vmatpush2.msra.mxu0 0.0
  %491 = vmatprep.subr.mxu0 0.0
  %492 = vmatpush2.msra.mxu0 0.0
  %493 = vmatprep.subr.mxu0 0.0
  %494 = vmatpush2.msra.mxu0 0.0
  %495 = vmatprep.subr.mxu0 0.0
  %496 = vmatpush2.msra.mxu0 0.0
  %497 = vmatprep.subr.mxu0 0.0
  %498 = vmatpush2.msra.mxu0 0.0
  %499 = vmatprep.subr.mxu0 0.0
  %500 = vmatpush2.msra.mxu0 0.0
  %501 = vmatprep.subr.mxu0 0.0
  %502 = vmatpush2.msra.mxu0 0.0
  %503 = vmatprep.subr.mxu0 0.0
  %504 = vmatpush2.msra.mxu0 0.0
  %505 = vmatprep.subr.mxu0 0.0
  %506 = vmatpush2.msra.mxu0 0.0
  %507 = vmatprep.subr.mxu0 0.0
  %508 = vmatpush2.msra.mxu0 0.0
  %509 = vmatprep.subr.mxu0 0.0
  %510 = vmatpush2.msra.mxu0 0.0
  %511 = vmatprep.mubr.f32.mxu0 0.0
  %512 = vmatmul.mubr.f32.gmra.mxu0 %v445
  %v513 = vpop.f32.mrf.mxu0
  %v514 = vadd.f32 0.0, %v513
  %v515 = vpop.f32.mrf.mxu0
  %516 = vdwg.mxu0
  %v517 = vrcp.pop %v514
  %v518 = vmul.f32 %v434, %v517
  %v519 = vld [vmem:[%s12] sm:$0x3f]
  %v520 = vmul.f32 %v518, %v519
  %v522 = vsel %vm443, %v520, 0
  %524 = vmatprep.subr.mxu0 0.0
  %525 = vmatpush1.msra.mxu0 0.0
  %526 = vmatprep.subr.mxu0 0.0
  %527 = vmatpush1.msra.mxu0 0.0
  %528 = vmatprep.subr.mxu0 0.0
  %529 = vmatpush1.msra.mxu0 0.0
  %530 = vmatprep.subr.mxu0 0.0
  %531 = vmatpush1.msra.mxu0 0.0
  %532 = vmatprep.subr.mxu0 0.0
  %533 = vmatpush1.msra.mxu0 0.0
  %534 = vmatprep.subr.mxu0 0.0
  %535 = vmatpush1.msra.mxu0 0.0
  %536 = vmatprep.subr.mxu0 0.0
  %537 = vmatpush1.msra.mxu0 0.0
  %538 = vmatprep.subr.mxu0 0.0
  %539 = vmatpush1.msra.mxu0 0.0
  %540 = vmatprep.subr.mxu0 0.0
  %541 = vmatpush1.msra.mxu0 %v329
  %542 = vmatprep.subr.mxu0 0.0
  %543 = vmatpush1.msra.mxu0 %v328
  %544 = vmatprep.subr.mxu0 0.0
  %545 = vmatpush1.msra.mxu0 %v327
  %546 = vmatprep.subr.mxu0 0.0
  %547 = vmatpush1.msra.mxu0 %v326
  %548 = vmatprep.subr.mxu0 0.0
  %549 = vmatpush1.msra.mxu0 %v325
  %550 = vmatprep.subr.mxu0 0.0
  %551 = vmatpush1.msra.mxu0 %v324
  %552 = vmatprep.subr.mxu0 0.0
  %553 = vmatpush1.msra.mxu0 %v323
  %554 = vmatprep.subr.mxu0 0.0
  %555 = vmatpush1.msra.mxu0 %v322
  %556 = vmatprep.subr.mxu0 0.0
  %557 = vmatpush2.msra.mxu0 0.0
  %558 = vmatprep.subr.mxu0 0.0
  %559 = vmatpush2.msra.mxu0 0.0
  %560 = vmatprep.subr.mxu0 0.0
  %561 = vmatpush2.msra.mxu0 0.0
  %562 = vmatprep.subr.mxu0 0.0
  %563 = vmatpush2.msra.mxu0 0.0
  %564 = vmatprep.subr.mxu0 0.0
  %565 = vmatpush2.msra.mxu0 0.0
  %566 = vmatprep.subr.mxu0 0.0
  %567 = vmatpush2.msra.mxu0 0.0
  %568 = vmatprep.subr.mxu0 0.0
  %569 = vmatpush2.msra.mxu0 0.0
  %570 = vmatprep.subr.mxu0 0.0
  %571 = vmatpush2.msra.mxu0 0.0
  %572 = vmatprep.subr.mxu0 0.0
  %573 = vmatpush2.msra.mxu0 0.0
  %574 = vmatprep.subr.mxu0 0.0
  %575 = vmatpush2.msra.mxu0 0.0
  %576 = vmatprep.subr.mxu0 0.0
  %577 = vmatpush2.msra.mxu0 0.0
  %578 = vmatprep.subr.mxu0 0.0
  %579 = vmatpush2.msra.mxu0 0.0
  %580 = vmatprep.subr.mxu0 0.0
  %581 = vmatpush2.msra.mxu0 0.0
  %582 = vmatprep.subr.mxu0 0.0
  %583 = vmatpush2.msra.mxu0 0.0
  %584 = vmatprep.subr.mxu0 0.0
  %585 = vmatpush2.msra.mxu0 0.0
  %586 = vmatprep.subr.mxu0 0.0
  %587 = vmatpush2.msra.mxu0 0.0
  %588 = vmatprep.mubr.f32.mxu0 0.0
  %589 = vmatmul.mubr.f32.gmra.mxu0 %v522
  %v590 = vpop.f32.mrf.mxu0
  %v591 = vadd.f32 0.0, %v590
  %v592 = vpop.f32.mrf.mxu0
  %593 = vdwg.mxu0
  %v594 = vadd.f32 %v305, %v591
  %v595 = vld [vmem:[%s8] sm:$0xff]
  %v596 = vld [vmem:[%s9] sm:$0x1]
  %v598 = vlaneseq
  %v599 = vshrl.u32 %v598, 7
  %v600 = vsub.s32 0, %v599
  %v601 = vrot.slane %v596, %v600
  %v604 = vsel %vm53, %v594, 0
  %606 = vmatprep.subr.mxu0 0.0
  %607 = vmatpush1.msra.mxu0 0.0
  %608 = vmatprep.subr.mxu0 0.0
  %609 = vmatpush1.msra.mxu0 0.0
  %610 = vmatprep.subr.mxu0 0.0
  %611 = vmatpush1.msra.mxu0 0.0
  %612 = vmatprep.subr.mxu0 0.0
  %613 = vmatpush1.msra.mxu0 0.0
  %614 = vmatprep.subr.mxu0 0.0
  %615 = vmatpush1.msra.mxu0 0.0
  %616 = vmatprep.subr.mxu0 0.0
  %617 = vmatpush1.msra.mxu0 0.0
  %618 = vmatprep.subr.mxu0 0.0
  %619 = vmatpush1.msra.mxu0 0.0
  %620 = vmatprep.subr.mxu0 0.0
  %621 = vmatpush1.msra.mxu0 0.0
  %622 = vmatprep.subr.mxu0 0.0
  %623 = vmatpush1.msra.mxu0 0.0
  %624 = vmatprep.subr.mxu0 0.0
  %625 = vmatpush1.msra.mxu0 0.0
  %626 = vmatprep.subr.mxu0 0.0
  %627 = vmatpush1.msra.mxu0 0.0
  %628 = vmatprep.subr.mxu0 0.0
  %629 = vmatpush1.msra.mxu0 0.0
  %630 = vmatprep.subr.mxu0 0.0
  %631 = vmatpush1.msra.mxu0 0.0
  %632 = vmatprep.subr.mxu0 0.0
  %633 = vmatpush1.msra.mxu0 0.0
  %634 = vmatprep.subr.mxu0 0.0
  %635 = vmatpush1.msra.mxu0 0.0
  %636 = vmatprep.subr.mxu0 0.0
  %637 = vmatpush1.msra.mxu0 %v595
  %638 = vmatprep.subr.mxu0 0.0
  %639 = vmatpush2.msra.mxu0 0.0
  %640 = vmatprep.subr.mxu0 0.0
  %641 = vmatpush2.msra.mxu0 0.0
  %642 = vmatprep.subr.mxu0 0.0
  %643 = vmatpush2.msra.mxu0 0.0
  %644 = vmatprep.subr.mxu0 0.0
  %645 = vmatpush2.msra.mxu0 0.0
  %646 = vmatprep.subr.mxu0 0.0
  %647 = vmatpush2.msra.mxu0 0.0
  %648 = vmatprep.subr.mxu0 0.0
  %649 = vmatpush2.msra.mxu0 0.0
  %650 = vmatprep.subr.mxu0 0.0
  %651 = vmatpush2.msra.mxu0 0.0
  %652 = vmatprep.subr.mxu0 0.0
  %653 = vmatpush2.msra.mxu0 0.0
  %654 = vmatprep.subr.mxu0 0.0
  %655 = vmatpush2.msra.mxu0 0.0
  %656 = vmatprep.subr.mxu0 0.0
  %657 = vmatpush2.msra.mxu0 0.0
  %658 = vmatprep.subr.mxu0 0.0
  %659 = vmatpush2.msra.mxu0 0.0
  %660 = vmatprep.subr.mxu0 0.0
  %661 = vmatpush2.msra.mxu0 0.0
  %662 = vmatprep.subr.mxu0 0.0
  %663 = vmatpush2.msra.mxu0 0.0
  %664 = vmatprep.subr.mxu0 0.0
  %665 = vmatpush2.msra.mxu0 0.0
  %666 = vmatprep.subr.mxu0 0.0
  %667 = vmatpush2.msra.mxu0 0.0
  %668 = vmatprep.subr.mxu0 0.0
  %669 = vmatpush2.msra.mxu0 0.0
  %670 = vmatprep.mubr.f32.mxu0 0.0
  %671 = vmatmul.mubr.f32.gmra.mxu0 %v604
  %v672 = vpop.f32.mrf.mxu0
  %v673 = vadd.f32 %v601, %v672
  %v674 = vpop.f32.mrf.mxu0
  %675 = vdwg.mxu0
  %v676 = vmax.f32 %v673, 0.0
  %v677 = vadd.f32 %v594, %v676
  %vm678 = vcmask 62464
  %679 = vst.msk [vmem:[%s13] sm:$0x3f] %vm678, %v677
  // Predicated region
  $region54: #{pma_forward.1} parent=0 // pred_check
    _
  $region55: #{pma_forward.1} parent=0 // pred_check_branch
    %681 = sbr.rel (0) target = $region57
  $region56: #{pma_forward.1} parent=0 // pred_region
    _
  $region57: #{pma_forward.1} parent=0 // pred_fallthru
    _
  // Predicated region
  $region58: #{pma_forward.1} parent=0 // pred_check
    _
  $region59: #{pma_forward.1} parent=0 // pred_check_branch
    %683 = sbr.rel (0) target = $region61
  $region60: #{pma_forward.1} parent=0 // pred_region
    _
  $region61: #{pma_forward.1} parent=0 // pred_fallthru
    _

</llo_original>
